<compile_context>
chip_gen: v5e
topology: v5e:2x2
jax: 0.10.0
libtpu: 0.0.40
codegen_flags: <defaults>
</compile_context>

<pallas_src>
import numpy as np
import jax
import jax.numpy as jnp
from jax import lax
from jax.experimental import pallas as pl
from jax.experimental.pallas import tpu as pltpu

_VMEM_LIMIT = 32 * 1024 * 1024  # raise scoped-VMEM default (v5e default is 16 MiB)


# ---------------------------------------------------------------------------
# Kernel 1: fused multi-head self-attention (+ residual + LayerNorm)
# ---------------------------------------------------------------------------
def _make_mha_kernel(n_head, d_k, d_v, seq_len, current, return_attn,
                     ln_eps=1e-5):
    qd = n_head * d_k

    def body(x_ref, wqkv_ref, bqkv_ref, wo_ref, bo_ref, gamma_ref, beta_ref,
             out_ref, attn_ref):
        x = x_ref[0]                                          # (S, D)
        xb = x.astype(jnp.bfloat16)

        # Fused lane-dense QKV projection (Q columns carry the folded
        # 1/sqrt(d_k) scale); bf16 operands, fp32 accumulation.
        qkv = jnp.dot(xb, wqkv_ref[...],
                      preferred_element_type=jnp.float32) + bqkv_ref[...]
        q_all = qkv[:, :qd]
        k_all = qkv[:, qd:2 * qd]
        v_all = qkv[:, 2 * qd:]

        # causal mask tril(ones, diagonal=-current), built in-registers
        row = lax.broadcasted_iota(jnp.int32, (seq_len, seq_len), 0)
        col = lax.broadcasted_iota(jnp.int32, (seq_len, seq_len), 1)
        keep = col <= (row - current)

        # TODO(synk): for large n_head / seq_len move heads (and a query tile,
        # flash-style) onto grid axes instead of this static unroll so weights
        # stream and live ranges stay bounded.
        ctx_heads = []
        for h in range(n_head):                               # static unroll
            qh = q_all[:, h * d_k:(h + 1) * d_k].astype(jnp.bfloat16)
            kh = k_all[:, h * d_k:(h + 1) * d_k].astype(jnp.bfloat16)
            vh = v_all[:, h * d_v:(h + 1) * d_v].astype(jnp.bfloat16)

            s = lax.dot_general(qh, kh, (((1,), (1,)), ((), ())),
                                preferred_element_type=jnp.float32)  # (S, S)
            s = jnp.where(keep, s, -1e32)
            m = jnp.max(s, axis=-1, keepdims=True)
            e = jnp.exp(s - m)            # masked entries underflow to exact 0
            p = e * pl.reciprocal(jnp.sum(e, axis=-1, keepdims=True),
                                  approx=True)
            if current > 0:
                # fully-masked rows (r < current) would otherwise be uniform
                # 1/S; the reference (pad_zero + attn*mask) zeroes them.
                p = jnp.where(row < current, 0.0, p)
            if attn_ref is not None:
                attn_ref[0, h] = p
            ctx_heads.append(jnp.dot(p.astype(jnp.bfloat16), vh,
                                     preferred_element_type=jnp.float32))

        # Single lane-dense output projection over all heads at once.
        ctx = jnp.concatenate(ctx_heads, axis=-1).astype(jnp.bfloat16)
        y = jnp.dot(ctx, wo_ref[...], preferred_element_type=jnp.float32)
        # TODO(synk): nn.Dropout on fc output omitted (identity in eval mode).
        y = y + bo_ref[...] + x.astype(jnp.float32)           # fc bias + residual
        mean = jnp.mean(y, axis=-1, keepdims=True)
        var = jnp.mean(jnp.square(y - mean), axis=-1, keepdims=True)
        y = (y - mean) * lax.rsqrt(var + ln_eps)
        out_ref[0] = (y * gamma_ref[...] + beta_ref[...]).astype(out_ref.dtype)

    if return_attn:
        def kernel(x_ref, wqkv, bqkv, wo, bo, g, b, out_ref, attn_ref):
            body(x_ref, wqkv, bqkv, wo, bo, g, b, out_ref, attn_ref)
    else:
        def kernel(x_ref, wqkv, bqkv, wo, bo, g, b, out_ref):
            body(x_ref, wqkv, bqkv, wo, bo, g, b, out_ref, None)
    return kernel


def multi_head_attention(x, p, n_head, d_k, d_v, current=0, return_attn=True):
    """x: (B, S, D).  p holds the fused/stacked bf16 weights (kernel layout)."""
    B, S, D = x.shape
    H = n_head

    def full(arr):
        nd = arr.ndim
        return pl.BlockSpec(arr.shape, lambda b: (0,) * nd)

    kernel = _make_mha_kernel(H, d_k, d_v, S, current, return_attn)

    out_spec = pl.BlockSpec((1, S, D), lambda b: (b, 0, 0))
    if return_attn:
        out_shape = (jax.ShapeDtypeStruct((B, S, D), x.dtype),
                     jax.ShapeDtypeStruct((B, H, S, S), jnp.float32))
        out_specs = (out_spec,
                     pl.BlockSpec((1, H, S, S), lambda b: (b, 0, 0, 0)))
    else:
        out_shape = jax.ShapeDtypeStruct((B, S, D), x.dtype)
        out_specs = out_spec

    # TODO(synk): for production S/D add a query-tile grid axis (flash-style
    # running max/sum) so per-step VMEM stays bounded and both v7x TensorCores
    # get work even at B=1.
    res = pl.pallas_call(
        kernel,
        out_shape=out_shape,
        grid_spec=pltpu.PrefetchScalarGridSpec(
            num_scalar_prefetch=0,
            grid=(B,),
            in_specs=[pl.BlockSpec((1, S, D), lambda b: (b, 0, 0)),
                      full(p["wqkv"]), full(p["bqkv"]),
                      full(p["wo"]), full(p["bo"]),
                      full(p["gamma"]), full(p["beta"])],
            out_specs=out_specs,
        ),
        compiler_params=pltpu.CompilerParams(
            dimension_semantics=("parallel",),
            vmem_limit_bytes=_VMEM_LIMIT,
        ),
    )(x, p["wqkv"], p["bqkv"], p["wo"], p["bo"], p["gamma"], p["beta"])

    if return_attn:
        out, attn = res
        return out, attn
    return res, None


# ---------------------------------------------------------------------------
# Kernel 2: fused position-wise FFN (+ residual + LayerNorm, eps=1e-6)
# ---------------------------------------------------------------------------
def _ffn_kernel(x_ref, w1_ref, b1_ref, w2_ref, b2_ref, gamma_ref, beta_ref,
                out_ref):
    x = x_ref[...]                                            # (tile, D)
    xb = x.astype(jnp.bfloat16)
    h = jnp.dot(xb, w1_ref[...], preferred_element_type=jnp.float32) + b1_ref[...]
    h = jnp.maximum(h, 0.0).astype(jnp.bfloat16)   # largest activation kept bf16
    # TODO(synk): nn.Dropout on w_2 output omitted (identity in eval mode).
    y = jnp.dot(h, w2_ref[...], preferred_element_type=jnp.float32)
    y = y + b2_ref[...] + x.astype(jnp.float32)
    mean = jnp.mean(y, axis=-1, keepdims=True)
    var = jnp.mean(jnp.square(y - mean), axis=-1, keepdims=True)
    y = (y - mean) * lax.rsqrt(var + 1e-6)
    out_ref[...] = (y * gamma_ref[...] + beta_ref[...]).astype(out_ref.dtype)


def _pick_row_tile(n_rows, d_model, d_inner, budget_bytes=8 << 20):
    """Largest row tile dividing n_rows that fits a VMEM activation budget,
    preferring MXU-aligned (multiple-of-256) tiles (v6e/v7x M dimension)."""
    def fits(t):
        return t * (12 * d_model + 2 * d_inner) <= budget_bytes
    divisors = [t for t in range(8, n_rows + 1, 8) if n_rows % t == 0]
    if not divisors:
        return n_rows
    fitting = [t for t in divisors if fits(t)] or [min(divisors)]
    aligned = [t for t in fitting if t % 256 == 0]
    return max(aligned) if aligned else max(fitting)


def positionwise_ffn(x, p):
    B, S, D = x.shape
    N = B * S
    xf = x.reshape(N, D)           # flatten tokens -> large lane-dense blocks
    tile = _pick_row_tile(N, D, p["w1"].shape[1])

    def full(arr):
        nd = arr.ndim
        return pl.BlockSpec(arr.shape, lambda i: (0,) * nd)

    # TODO(synk): at production d_inner add a d_inner grid axis (accumulate the
    # second matmul into VMEM scratch) so w1/w2 stream instead of sitting
    # fully resident in VMEM.
    out = pl.pallas_call(
        _ffn_kernel,
        out_shape=jax.ShapeDtypeStruct((N, D), x.dtype),
        grid_spec=pltpu.PrefetchScalarGridSpec(
            num_scalar_prefetch=0,
            grid=(N // tile,),
            in_specs=[pl.BlockSpec((tile, D), lambda i: (i, 0)),
                      full(p["w1"]), full(p["b1"]),
                      full(p["w2"]), full(p["b2"]),
                      full(p["gamma"]), full(p["beta"])],
            out_specs=pl.BlockSpec((tile, D), lambda i: (i, 0)),
        ),
        compiler_params=pltpu.CompilerParams(
            dimension_semantics=("parallel",),
            vmem_limit_bytes=_VMEM_LIMIT,
        ),
    )(xf, p["w1"], p["b1"], p["w2"], p["b2"], p["gamma"], p["beta"])
    return out.reshape(B, S, D)


def encoder_layer(x, mha_p, ffn_p, n_head, d_k, d_v, current=0,
                  return_attn=True):
    enc_output, enc_slf_attn = multi_head_attention(
        x, mha_p, n_head, d_k, d_v, current=current, return_attn=return_attn)
    enc_output = positionwise_ffn(enc_output, ffn_p)
    return enc_output, enc_slf_attn


# ---------------------------------------------------------------------------
# Parameter construction + pure-JAX reference (mirrors the PyTorch math, with
# the same bf16 weights / bf16 matmul operands as the kernel)
# ---------------------------------------------------------------------------
def _xavier(key, shape):
    lim = np.sqrt(6.0 / (shape[0] + shape[1]))
    return jax.random.uniform(key, shape, jnp.float32, -lim, lim)


def init_flat_params(key, d_model, d_inner, n_head, d_k, d_v):
    ks = jax.random.split(key, 14)
    return {
        "wq": _xavier(ks[0], (d_model, n_head * d_k)),
        "wk": _xavier(ks[1], (d_model, n_head * d_k)),
        "wv": _xavier(ks[2], (d_model, n_head * d_v)),
        "wo": _xavier(ks[3], (n_head * d_v, d_model)),
        "bq": 0.02 * jax.random.normal(ks[4], (n_head * d_k,), jnp.float32),
        "bk": 0.02 * jax.random.normal(ks[5], (n_head * d_k,), jnp.float32),
        "bv": 0.02 * jax.random.normal(ks[6], (n_head * d_v,), jnp.float32),
        "bo": 0.02 * jax.random.normal(ks[7], (d_model,), jnp.float32),
        "gamma1": 1.0 + 0.1 * jax.random.normal(ks[8], (d_model,), jnp.float32),
        "beta1": 0.1 * jax.random.normal(ks[9], (d_model,), jnp.float32),
        "w1": _xavier(ks[10], (d_model, d_inner)),
        "b1": 0.02 * jax.random.normal(ks[11], (d_inner,), jnp.float32),
        "w2": _xavier(ks[12], (d_inner, d_model)),
        "b2": 0.02 * jax.random.normal(ks[13], (d_model,), jnp.float32),
        "gamma2": jnp.ones((d_model,), jnp.float32),
        "beta2": jnp.zeros((d_model,), jnp.float32),
        "n_head": n_head, "d_k": d_k, "d_v": d_v,
    }


def to_kernel_layout(f):
    d_k = f["d_k"]
    scale = 1.0 / float(d_k) ** 0.5       # fold 1/temperature into Wq, bq
    wqkv = jnp.concatenate([f["wq"] * scale, f["wk"], f["wv"]], axis=1)
    bqkv = jnp.concatenate([f["bq"] * scale, f["bk"], f["bv"]])
    mha_p = {
        "wqkv": wqkv.astype(jnp.bfloat16),          # (D, 2*H*dk + H*dv)
        "bqkv": bqkv.reshape(1, -1).astype(jnp.float32),
        "wo": f["wo"].astype(jnp.bfloat16),         # (H*dv, D)
        "bo": f["bo"].reshape(1, -1),
        "gamma": f["gamma1"].reshape(1, -1),
        "beta": f["beta1"].reshape(1, -1),
    }
    ffn_p = {
        "w1": f["w1"].astype(jnp.bfloat16), "b1": f["b1"].reshape(1, -1),
        "w2": f["w2"].astype(jnp.bfloat16), "b2": f["b2"].reshape(1, -1),
        "gamma": f["gamma2"].reshape(1, -1), "beta": f["beta2"].reshape(1, -1),
    }
    return mha_p, ffn_p


def _layernorm(x, gamma, beta, eps):
    mean = jnp.mean(x, axis=-1, keepdims=True)
    var = jnp.mean(jnp.square(x - mean), axis=-1, keepdims=True)
    return (x - mean) * jax.lax.rsqrt(var + eps) * gamma + beta


def ref_encoder_layer(x, mha_p, ffn_p, H, d_k, d_v, current=0):
    bf, f32 = jnp.bfloat16, jnp.float32
    B, S, D = x.shape
    qd = H * d_k

    xf = x.reshape(B * S, D)
    qkv = jnp.dot(xf.astype(bf), mha_p["wqkv"],
                  preferred_element_type=f32) + mha_p["bqkv"]
    qkv = qkv.reshape(B, S, -1)
    q = qkv[..., :qd].reshape(B, S, H, d_k).transpose(0, 2, 1, 3)
    k = qkv[..., qd:2 * qd].reshape(B, S, H, d_k).transpose(0, 2, 1, 3)
    v = qkv[..., 2 * qd:].reshape(B, S, H, d_v).transpose(0, 2, 1, 3)

    mask = jnp.tril(jnp.ones((S, S), f32), k=-current)
    s = jnp.einsum("bhqd,bhkd->bhqk", q.astype(bf), k.astype(bf),
                   preferred_element_type=f32)
    s = jnp.where(mask == 0, -1e32, s)
    attn = jax.nn.softmax(s, axis=-1)
    if current == 1:
        attn = attn.at[:, :, 0, :].set(0.0)
    attn = attn * mask
    ctx = jnp.einsum("bhqk,bhkd->bhqd", attn.astype(bf), v.astype(bf),
                     preferred_element_type=f32)
    ctx = ctx.transpose(0, 2, 1, 3).reshape(B * S, H * d_v)
    y = jnp.dot(ctx.astype(bf), mha_p["wo"],
                preferred_element_type=f32).reshape(B, S, D)
    y = y + mha_p["bo"] + x
    y = _layernorm(y, mha_p["gamma"], mha_p["beta"], 1e-5)

    yf = y.reshape(B * S, D)
    h = jnp.maximum(jnp.dot(yf.astype(bf), ffn_p["w1"],
                            preferred_element_type=f32) + ffn_p["b1"], 0.0)
    z = jnp.dot(h.astype(bf), ffn_p["w2"],
                preferred_element_type=f32) + ffn_p["b2"] + yf
    z = _layernorm(z, ffn_p["gamma"], ffn_p["beta"], 1e-6)
    return z.reshape(B, S, D), attn


if __name__ == "__main__":
    d_model, d_inner, n_head, d_k, d_v = 32, 64, 4, 8, 8
    batch, seq = 2, 8

    key = jax.random.PRNGKey(0)
    kx, kp = jax.random.split(key)
    x = jax.random.normal(kx, (batch, seq, d_model), jnp.float32)

    flat = init_flat_params(kp, d_model, d_inner, n_head, d_k, d_v)
    mha_p, ffn_p = to_kernel_layout(flat)

    for current in (0, 1):   # EncoderLayer.forward default is current=0
        out, attn = encoder_layer(x, mha_p, ffn_p, n_head, d_k, d_v,
                                  current=current)
        out = jax.block_until_ready(out)
        attn = jax.block_until_ready(attn)

        ref_out, ref_attn = ref_encoder_layer(x, mha_p, ffn_p, n_head, d_k, d_v,
                                              current=current)
        # bf16 MXU operands + EUP approx-reciprocal softmax -> loose tolerances
        np.testing.assert_allclose(np.asarray(attn), np.asarray(ref_attn),
                                   rtol=2e-2, atol=1e-2)
        np.testing.assert_allclose(np.asarray(out), np.asarray(ref_out),
                                   rtol=2e-2, atol=1e-2)

    print("KERNEL_OK")
</pallas_src>

<mosaic_0001>
module attributes {stable_mosaic.version = 11 : i64} {
  func.func @kernel(%arg0: i32, %arg1: memref<1x8x32xf32, #tpu.memory_space<vmem>>, %arg2: memref<32x96xbf16, #tpu.memory_space<vmem>>, %arg3: memref<1x96xf32, #tpu.memory_space<vmem>>, %arg4: memref<32x32xbf16, #tpu.memory_space<vmem>>, %arg5: memref<1x32xf32, #tpu.memory_space<vmem>>, %arg6: memref<1x32xf32, #tpu.memory_space<vmem>>, %arg7: memref<1x32xf32, #tpu.memory_space<vmem>>, %arg8: memref<1x8x32xf32, #tpu.memory_space<vmem>>, %arg9: memref<1x4x8x8xf32, #tpu.memory_space<vmem>>) attributes {dimension_semantics = [#tpu.dimension_semantics<parallel>], iteration_bounds = array<i64: 2>, scalar_prefetch = 0 : i64, scratch_operands = 0 : i64, tpu.core_type = #tpu.core_type<tc>, window_params = [{transform_indices = @transform_0, window_bounds = array<i64: 1, 8, 32>}, {pipeline_mode = #tpu.pipeline_mode<synchronous>, transform_indices = @transform_1, window_bounds = array<i64: 32, 96>}, {pipeline_mode = #tpu.pipeline_mode<synchronous>, transform_indices = @transform_2, window_bounds = array<i64: 1, 96>}, {pipeline_mode = #tpu.pipeline_mode<synchronous>, transform_indices = @transform_3, window_bounds = array<i64: 32, 32>}, {pipeline_mode = #tpu.pipeline_mode<synchronous>, transform_indices = @transform_4, window_bounds = array<i64: 1, 32>}, {pipeline_mode = #tpu.pipeline_mode<synchronous>, transform_indices = @transform_5, window_bounds = array<i64: 1, 32>}, {pipeline_mode = #tpu.pipeline_mode<synchronous>, transform_indices = @transform_6, window_bounds = array<i64: 1, 32>}, {transform_indices = @transform_7, window_bounds = array<i64: 1, 8, 32>}, {transform_indices = @transform_8, window_bounds = array<i64: 1, 4, 8, 8>}]} {
    %c0 = arith.constant 0 : index
    %c0_0 = arith.constant 0 : index
    %c0_1 = arith.constant 0 : index
    %0 = vector.load %arg1[%c0, %c0_0, %c0_1] : memref<1x8x32xf32, #tpu.memory_space<vmem>>, vector<1x8x32xf32>
    %1 = vector.shape_cast %0 : vector<1x8x32xf32> to vector<8x32xf32>
    %2 = arith.truncf %1 : vector<8x32xf32> to vector<8x32xbf16>
    %c0_2 = arith.constant 0 : index
    %c0_3 = arith.constant 0 : index
    %3 = vector.load %arg2[%c0_2, %c0_3] : memref<32x96xbf16, #tpu.memory_space<vmem>>, vector<32x96xbf16>
    %cst = arith.constant dense<0.000000e+00> : vector<8x96xf32>
    %4 = tpu.matmul %2, %3, %cst {dimension_numbers = #tpu.dot_dimension_numbers<[1], [0], [0], [1], [0, 0, 1, 1], [], []>} : vector<8x32xbf16>, vector<32x96xbf16>, vector<8x96xf32> -> vector<8x96xf32>
    %c0_4 = arith.constant 0 : index
    %c0_5 = arith.constant 0 : index
    %5 = vector.load %arg3[%c0_4, %c0_5] : memref<1x96xf32, #tpu.memory_space<vmem>>, vector<1x96xf32>
    %6 = vector.broadcast %5 : vector<1x96xf32> to vector<8x96xf32>
    %7 = arith.addf %4, %6 : vector<8x96xf32>
    %8 = vector.extract_strided_slice %7 {offsets = [0, 0], sizes = [8, 32], strides = [1, 1]} : vector<8x96xf32> to vector<8x32xf32>
    %9 = vector.extract_strided_slice %7 {offsets = [0, 32], sizes = [8, 32], strides = [1, 1]} : vector<8x96xf32> to vector<8x32xf32>
    %10 = vector.extract_strided_slice %7 {offsets = [0, 64], sizes = [8, 32], strides = [1, 1]} : vector<8x96xf32> to vector<8x32xf32>
    %11 = tpu.iota {dimensions = array<i32: 0>} : vector<8x8xi32>
    %12 = tpu.iota {dimensions = array<i32: 1>} : vector<8x8xi32>
    %c0_i32 = arith.constant 0 : i32
    %13 = vector.broadcast %c0_i32 : i32 to vector<8x8xi32>
    %14 = arith.subi %11, %13 : vector<8x8xi32>
    %15 = arith.cmpi sle, %12, %14 : vector<8x8xi32>
    %16 = vector.extract_strided_slice %8 {offsets = [0, 0], sizes = [8, 8], strides = [1, 1]} : vector<8x32xf32> to vector<8x8xf32>
    %17 = arith.truncf %16 : vector<8x8xf32> to vector<8x8xbf16>
    %18 = vector.extract_strided_slice %9 {offsets = [0, 0], sizes = [8, 8], strides = [1, 1]} : vector<8x32xf32> to vector<8x8xf32>
    %19 = arith.truncf %18 : vector<8x8xf32> to vector<8x8xbf16>
    %20 = vector.extract_strided_slice %10 {offsets = [0, 0], sizes = [8, 8], strides = [1, 1]} : vector<8x32xf32> to vector<8x8xf32>
    %21 = arith.truncf %20 : vector<8x8xf32> to vector<8x8xbf16>
    %cst_6 = arith.constant dense<0.000000e+00> : vector<8x8xf32>
    %22 = tpu.matmul %17, %19, %cst_6 {dimension_numbers = #tpu.dot_dimension_numbers<[1], [1], [0], [0], [0, 0, 1, 0], [], []>} : vector<8x8xbf16>, vector<8x8xbf16>, vector<8x8xf32> -> vector<8x8xf32>
    %cst_7 = arith.constant -1.000000e+32 : f32
    %23 = vector.broadcast %cst_7 : f32 to vector<8x8xf32>
    %24 = arith.select %15, %22, %23 : vector<8x8xi1>, vector<8x8xf32>
    %cst_8 = arith.constant dense<0xFF800000> : vector<8xf32>
    %25 = vector.multi_reduction <maximumf>, %24, %cst_8 [1] : vector<8x8xf32> to vector<8xf32>
    %26 = vector.shape_cast %25 : vector<8xf32> to vector<8x1xf32>
    %27 = vector.broadcast %26 : vector<8x1xf32> to vector<8x8xf32>
    %28 = arith.subf %24, %27 : vector<8x8xf32>
    %29 = math.exp %28 : vector<8x8xf32>
    %cst_9 = arith.constant dense<0.000000e+00> : vector<8xf32>
    %30 = vector.multi_reduction <add>, %29, %cst_9 [1] : vector<8x8xf32> to vector<8xf32>
    %31 = vector.shape_cast %30 : vector<8xf32> to vector<8x1xf32>
    %32 = tpu.reciprocal %31 {approx = true} : vector<8x1xf32> -> vector<8x1xf32>
    %33 = vector.broadcast %32 : vector<8x1xf32> to vector<8x8xf32>
    %34 = arith.mulf %29, %33 : vector<8x8xf32>
    %c0_10 = arith.constant 0 : index
    %c0_11 = arith.constant 0 : index
    %c0_12 = arith.constant 0 : index
    %c0_13 = arith.constant 0 : index
    %35 = vector.load %arg9[%c0_10, %c0_11, %c0_12, %c0_13] : memref<1x4x8x8xf32, #tpu.memory_space<vmem>>, vector<1x1x8x8xf32>
    %36 = vector.shape_cast %35 : vector<1x1x8x8xf32> to vector<8x8xf32>
    %37 = vector.shape_cast %34 : vector<8x8xf32> to vector<1x1x8x8xf32>
    tpu.vector_store %arg9[%c0_10, %c0_11, %c0_12, %c0_13], %37 {strides = array<i32>} : memref<1x4x8x8xf32, #tpu.memory_space<vmem>>, vector<1x1x8x8xf32>,
    %38 = arith.truncf %34 : vector<8x8xf32> to vector<8x8xbf16>
    %cst_14 = arith.constant dense<0.000000e+00> : vector<8x8xf32>
    %39 = tpu.matmul %38, %21, %cst_14 {dimension_numbers = #tpu.dot_dimension_numbers<[1], [0], [0], [1], [0, 0, 1, 1], [], []>} : vector<8x8xbf16>, vector<8x8xbf16>, vector<8x8xf32> -> vector<8x8xf32>
    %40 = vector.extract_strided_slice %8 {offsets = [0, 8], sizes = [8, 8], strides = [1, 1]} : vector<8x32xf32> to vector<8x8xf32>
    %41 = arith.truncf %40 : vector<8x8xf32> to vector<8x8xbf16>
    %42 = vector.extract_strided_slice %9 {offsets = [0, 8], sizes = [8, 8], strides = [1, 1]} : vector<8x32xf32> to vector<8x8xf32>
    %43 = arith.truncf %42 : vector<8x8xf32> to vector<8x8xbf16>
    %44 = vector.extract_strided_slice %10 {offsets = [0, 8], sizes = [8, 8], strides = [1, 1]} : vector<8x32xf32> to vector<8x8xf32>
    %45 = arith.truncf %44 : vector<8x8xf32> to vector<8x8xbf16>
    %cst_15 = arith.constant dense<0.000000e+00> : vector<8x8xf32>
    %46 = tpu.matmul %41, %43, %cst_15 {dimension_numbers = #tpu.dot_dimension_numbers<[1], [1], [0], [0], [0, 0, 1, 0], [], []>} : vector<8x8xbf16>, vector<8x8xbf16>, vector<8x8xf32> -> vector<8x8xf32>
    %cst_16 = arith.constant -1.000000e+32 : f32
    %47 = vector.broadcast %cst_16 : f32 to vector<8x8xf32>
    %48 = arith.select %15, %46, %47 : vector<8x8xi1>, vector<8x8xf32>
    %cst_17 = arith.constant dense<0xFF800000> : vector<8xf32>
    %49 = vector.multi_reduction <maximumf>, %48, %cst_17 [1] : vector<8x8xf32> to vector<8xf32>
    %50 = vector.shape_cast %49 : vector<8xf32> to vector<8x1xf32>
    %51 = vector.broadcast %50 : vector<8x1xf32> to vector<8x8xf32>
    %52 = arith.subf %48, %51 : vector<8x8xf32>
    %53 = math.exp %52 : vector<8x8xf32>
    %cst_18 = arith.constant dense<0.000000e+00> : vector<8xf32>
    %54 = vector.multi_reduction <add>, %53, %cst_18 [1] : vector<8x8xf32> to vector<8xf32>
    %55 = vector.shape_cast %54 : vector<8xf32> to vector<8x1xf32>
    %56 = tpu.reciprocal %55 {approx = true} : vector<8x1xf32> -> vector<8x1xf32>
    %57 = vector.broadcast %56 : vector<8x1xf32> to vector<8x8xf32>
    %58 = arith.mulf %53, %57 : vector<8x8xf32>
    %c0_19 = arith.constant 0 : index
    %c1 = arith.constant 1 : index
    %c0_20 = arith.constant 0 : index
    %c0_21 = arith.constant 0 : index
    %59 = vector.load %arg9[%c0_19, %c1, %c0_20, %c0_21] : memref<1x4x8x8xf32, #tpu.memory_space<vmem>>, vector<1x1x8x8xf32>
    %60 = vector.shape_cast %59 : vector<1x1x8x8xf32> to vector<8x8xf32>
    %61 = vector.shape_cast %58 : vector<8x8xf32> to vector<1x1x8x8xf32>
    tpu.vector_store %arg9[%c0_19, %c1, %c0_20, %c0_21], %61 {strides = array<i32>} : memref<1x4x8x8xf32, #tpu.memory_space<vmem>>, vector<1x1x8x8xf32>,
    %62 = arith.truncf %58 : vector<8x8xf32> to vector<8x8xbf16>
    %cst_22 = arith.constant dense<0.000000e+00> : vector<8x8xf32>
    %63 = tpu.matmul %62, %45, %cst_22 {dimension_numbers = #tpu.dot_dimension_numbers<[1], [0], [0], [1], [0, 0, 1, 1], [], []>} : vector<8x8xbf16>, vector<8x8xbf16>, vector<8x8xf32> -> vector<8x8xf32>
    %64 = vector.extract_strided_slice %8 {offsets = [0, 16], sizes = [8, 8], strides = [1, 1]} : vector<8x32xf32> to vector<8x8xf32>
    %65 = arith.truncf %64 : vector<8x8xf32> to vector<8x8xbf16>
    %66 = vector.extract_strided_slice %9 {offsets = [0, 16], sizes = [8, 8], strides = [1, 1]} : vector<8x32xf32> to vector<8x8xf32>
    %67 = arith.truncf %66 : vector<8x8xf32> to vector<8x8xbf16>
    %68 = vector.extract_strided_slice %10 {offsets = [0, 16], sizes = [8, 8], strides = [1, 1]} : vector<8x32xf32> to vector<8x8xf32>
    %69 = arith.truncf %68 : vector<8x8xf32> to vector<8x8xbf16>
    %cst_23 = arith.constant dense<0.000000e+00> : vector<8x8xf32>
    %70 = tpu.matmul %65, %67, %cst_23 {dimension_numbers = #tpu.dot_dimension_numbers<[1], [1], [0], [0], [0, 0, 1, 0], [], []>} : vector<8x8xbf16>, vector<8x8xbf16>, vector<8x8xf32> -> vector<8x8xf32>
    %cst_24 = arith.constant -1.000000e+32 : f32
    %71 = vector.broadcast %cst_24 : f32 to vector<8x8xf32>
    %72 = arith.select %15, %70, %71 : vector<8x8xi1>, vector<8x8xf32>
    %cst_25 = arith.constant dense<0xFF800000> : vector<8xf32>
    %73 = vector.multi_reduction <maximumf>, %72, %cst_25 [1] : vector<8x8xf32> to vector<8xf32>
    %74 = vector.shape_cast %73 : vector<8xf32> to vector<8x1xf32>
    %75 = vector.broadcast %74 : vector<8x1xf32> to vector<8x8xf32>
    %76 = arith.subf %72, %75 : vector<8x8xf32>
    %77 = math.exp %76 : vector<8x8xf32>
    %cst_26 = arith.constant dense<0.000000e+00> : vector<8xf32>
    %78 = vector.multi_reduction <add>, %77, %cst_26 [1] : vector<8x8xf32> to vector<8xf32>
    %79 = vector.shape_cast %78 : vector<8xf32> to vector<8x1xf32>
    %80 = tpu.reciprocal %79 {approx = true} : vector<8x1xf32> -> vector<8x1xf32>
    %81 = vector.broadcast %80 : vector<8x1xf32> to vector<8x8xf32>
    %82 = arith.mulf %77, %81 : vector<8x8xf32>
    %c0_27 = arith.constant 0 : index
    %c2 = arith.constant 2 : index
    %c0_28 = arith.constant 0 : index
    %c0_29 = arith.constant 0 : index
    %83 = vector.load %arg9[%c0_27, %c2, %c0_28, %c0_29] : memref<1x4x8x8xf32, #tpu.memory_space<vmem>>, vector<1x1x8x8xf32>
    %84 = vector.shape_cast %83 : vector<1x1x8x8xf32> to vector<8x8xf32>
    %85 = vector.shape_cast %82 : vector<8x8xf32> to vector<1x1x8x8xf32>
    tpu.vector_store %arg9[%c0_27, %c2, %c0_28, %c0_29], %85 {strides = array<i32>} : memref<1x4x8x8xf32, #tpu.memory_space<vmem>>, vector<1x1x8x8xf32>,
    %86 = arith.truncf %82 : vector<8x8xf32> to vector<8x8xbf16>
    %cst_30 = arith.constant dense<0.000000e+00> : vector<8x8xf32>
    %87 = tpu.matmul %86, %69, %cst_30 {dimension_numbers = #tpu.dot_dimension_numbers<[1], [0], [0], [1], [0, 0, 1, 1], [], []>} : vector<8x8xbf16>, vector<8x8xbf16>, vector<8x8xf32> -> vector<8x8xf32>
    %88 = vector.extract_strided_slice %8 {offsets = [0, 24], sizes = [8, 8], strides = [1, 1]} : vector<8x32xf32> to vector<8x8xf32>
    %89 = arith.truncf %88 : vector<8x8xf32> to vector<8x8xbf16>
    %90 = vector.extract_strided_slice %9 {offsets = [0, 24], sizes = [8, 8], strides = [1, 1]} : vector<8x32xf32> to vector<8x8xf32>
    %91 = arith.truncf %90 : vector<8x8xf32> to vector<8x8xbf16>
    %92 = vector.extract_strided_slice %10 {offsets = [0, 24], sizes = [8, 8], strides = [1, 1]} : vector<8x32xf32> to vector<8x8xf32>
    %93 = arith.truncf %92 : vector<8x8xf32> to vector<8x8xbf16>
    %cst_31 = arith.constant dense<0.000000e+00> : vector<8x8xf32>
    %94 = tpu.matmul %89, %91, %cst_31 {dimension_numbers = #tpu.dot_dimension_numbers<[1], [1], [0], [0], [0, 0, 1, 0], [], []>} : vector<8x8xbf16>, vector<8x8xbf16>, vector<8x8xf32> -> vector<8x8xf32>
    %cst_32 = arith.constant -1.000000e+32 : f32
    %95 = vector.broadcast %cst_32 : f32 to vector<8x8xf32>
    %96 = arith.select %15, %94, %95 : vector<8x8xi1>, vector<8x8xf32>
    %cst_33 = arith.constant dense<0xFF800000> : vector<8xf32>
    %97 = vector.multi_reduction <maximumf>, %96, %cst_33 [1] : vector<8x8xf32> to vector<8xf32>
    %98 = vector.shape_cast %97 : vector<8xf32> to vector<8x1xf32>
    %99 = vector.broadcast %98 : vector<8x1xf32> to vector<8x8xf32>
    %100 = arith.subf %96, %99 : vector<8x8xf32>
    %101 = math.exp %100 : vector<8x8xf32>
    %cst_34 = arith.constant dense<0.000000e+00> : vector<8xf32>
    %102 = vector.multi_reduction <add>, %101, %cst_34 [1] : vector<8x8xf32> to vector<8xf32>
    %103 = vector.shape_cast %102 : vector<8xf32> to vector<8x1xf32>
    %104 = tpu.reciprocal %103 {approx = true} : vector<8x1xf32> -> vector<8x1xf32>
    %105 = vector.broadcast %104 : vector<8x1xf32> to vector<8x8xf32>
    %106 = arith.mulf %101, %105 : vector<8x8xf32>
    %c0_35 = arith.constant 0 : index
    %c3 = arith.constant 3 : index
    %c0_36 = arith.constant 0 : index
    %c0_37 = arith.constant 0 : index
    %107 = vector.load %arg9[%c0_35, %c3, %c0_36, %c0_37] : memref<1x4x8x8xf32, #tpu.memory_space<vmem>>, vector<1x1x8x8xf32>
    %108 = vector.shape_cast %107 : vector<1x1x8x8xf32> to vector<8x8xf32>
    %109 = vector.shape_cast %106 : vector<8x8xf32> to vector<1x1x8x8xf32>
    tpu.vector_store %arg9[%c0_35, %c3, %c0_36, %c0_37], %109 {strides = array<i32>} : memref<1x4x8x8xf32, #tpu.memory_space<vmem>>, vector<1x1x8x8xf32>,
    %110 = arith.truncf %106 : vector<8x8xf32> to vector<8x8xbf16>
    %cst_38 = arith.constant dense<0.000000e+00> : vector<8x8xf32>
    %111 = tpu.matmul %110, %93, %cst_38 {dimension_numbers = #tpu.dot_dimension_numbers<[1], [0], [0], [1], [0, 0, 1, 1], [], []>} : vector<8x8xbf16>, vector<8x8xbf16>, vector<8x8xf32> -> vector<8x8xf32>
    %112 = tpu.concatenate %39, %63, %87, %111 in 1 : vector<8x8xf32>, vector<8x8xf32>, vector<8x8xf32>, vector<8x8xf32> -> vector<8x32xf32>
    %113 = arith.truncf %112 : vector<8x32xf32> to vector<8x32xbf16>
    %c0_39 = arith.constant 0 : index
    %c0_40 = arith.constant 0 : index
    %114 = vector.load %arg4[%c0_39, %c0_40] : memref<32x32xbf16, #tpu.memory_space<vmem>>, vector<32x32xbf16>
    %cst_41 = arith.constant dense<0.000000e+00> : vector<8x32xf32>
    %115 = tpu.matmul %113, %114, %cst_41 {dimension_numbers = #tpu.dot_dimension_numbers<[1], [0], [0], [1], [0, 0, 1, 1], [], []>} : vector<8x32xbf16>, vector<32x32xbf16>, vector<8x32xf32> -> vector<8x32xf32>
    %c0_42 = arith.constant 0 : index
    %c0_43 = arith.constant 0 : index
    %116 = vector.load %arg5[%c0_42, %c0_43] : memref<1x32xf32, #tpu.memory_space<vmem>>, vector<1x32xf32>
    %117 = vector.broadcast %116 : vector<1x32xf32> to vector<8x32xf32>
    %118 = arith.addf %115, %117 : vector<8x32xf32>
    %119 = arith.addf %118, %1 : vector<8x32xf32>
    %cst_44 = arith.constant dense<0.000000e+00> : vector<8xf32>
    %120 = vector.multi_reduction <add>, %119, %cst_44 [1] : vector<8x32xf32> to vector<8xf32>
    %121 = vector.shape_cast %120 : vector<8xf32> to vector<8x1xf32>
    %cst_45 = arith.constant 3.200000e+01 : f32
    %122 = vector.broadcast %cst_45 : f32 to vector<8x1xf32>
    %123 = arith.divf %121, %122 : vector<8x1xf32>
    %124 = vector.broadcast %123 : vector<8x1xf32> to vector<8x32xf32>
    %125 = arith.subf %119, %124 : vector<8x32xf32>
    %126 = arith.mulf %125, %125 : vector<8x32xf32>
    %cst_46 = arith.constant dense<0.000000e+00> : vector<8xf32>
    %127 = vector.multi_reduction <add>, %126, %cst_46 [1] : vector<8x32xf32> to vector<8xf32>
    %128 = vector.shape_cast %127 : vector<8xf32> to vector<8x1xf32>
    %cst_47 = arith.constant 3.200000e+01 : f32
    %129 = vector.broadcast %cst_47 : f32 to vector<8x1xf32>
    %130 = arith.divf %128, %129 : vector<8x1xf32>
    %131 = vector.broadcast %123 : vector<8x1xf32> to vector<8x32xf32>
    %132 = arith.subf %119, %131 : vector<8x32xf32>
    %cst_48 = arith.constant 9.99999974E-6 : f32
    %133 = vector.broadcast %cst_48 : f32 to vector<8x1xf32>
    %134 = arith.addf %130, %133 : vector<8x1xf32>
    %135 = math.rsqrt %134 : vector<8x1xf32>
    %136 = vector.broadcast %135 : vector<8x1xf32> to vector<8x32xf32>
    %137 = arith.mulf %132, %136 : vector<8x32xf32>
    %c0_49 = arith.constant 0 : index
    %c0_50 = arith.constant 0 : index
    %138 = vector.load %arg6[%c0_49, %c0_50] : memref<1x32xf32, #tpu.memory_space<vmem>>, vector<1x32xf32>
    %139 = vector.broadcast %138 : vector<1x32xf32> to vector<8x32xf32>
    %140 = arith.mulf %137, %139 : vector<8x32xf32>
    %c0_51 = arith.constant 0 : index
    %c0_52 = arith.constant 0 : index
    %141 = vector.load %arg7[%c0_51, %c0_52] : memref<1x32xf32, #tpu.memory_space<vmem>>, vector<1x32xf32>
    %142 = vector.broadcast %141 : vector<1x32xf32> to vector<8x32xf32>
    %143 = arith.addf %140, %142 : vector<8x32xf32>
    %c0_53 = arith.constant 0 : index
    %c0_54 = arith.constant 0 : index
    %c0_55 = arith.constant 0 : index
    %144 = vector.load %arg8[%c0_53, %c0_54, %c0_55] : memref<1x8x32xf32, #tpu.memory_space<vmem>>, vector<1x8x32xf32>
    %145 = vector.shape_cast %144 : vector<1x8x32xf32> to vector<8x32xf32>
    %146 = vector.shape_cast %143 : vector<8x32xf32> to vector<1x8x32xf32>
    tpu.vector_store %arg8[%c0_53, %c0_54, %c0_55], %146 {strides = array<i32>} : memref<1x8x32xf32, #tpu.memory_space<vmem>>, vector<1x8x32xf32>,
    return
  }
  func.func @transform_0(%arg0: i32) -> (i32, i32, i32) {
    %c0_i32 = arith.constant 0 : i32
    %c0_i32_0 = arith.constant 0 : i32
    %c0_i32_1 = arith.constant 0 : i32
    return %arg0, %c0_i32, %c0_i32_0 : i32, i32, i32
  }
  func.func @transform_1(%arg0: i32) -> (i32, i32) {
    %c0_i32 = arith.constant 0 : i32
    %c0_i32_0 = arith.constant 0 : i32
    %c0_i32_1 = arith.constant 0 : i32
    return %c0_i32, %c0_i32_0 : i32, i32
  }
  func.func @transform_2(%arg0: i32) -> (i32, i32) {
    %c0_i32 = arith.constant 0 : i32
    %c0_i32_0 = arith.constant 0 : i32
    %c0_i32_1 = arith.constant 0 : i32
    return %c0_i32, %c0_i32_0 : i32, i32
  }
  func.func @transform_3(%arg0: i32) -> (i32, i32) {
    %c0_i32 = arith.constant 0 : i32
    %c0_i32_0 = arith.constant 0 : i32
    %c0_i32_1 = arith.constant 0 : i32
    return %c0_i32, %c0_i32_0 : i32, i32
  }
  func.func @transform_4(%arg0: i32) -> (i32, i32) {
    %c0_i32 = arith.constant 0 : i32
    %c0_i32_0 = arith.constant 0 : i32
    %c0_i32_1 = arith.constant 0 : i32
    return %c0_i32, %c0_i32_0 : i32, i32
  }
  func.func @transform_5(%arg0: i32) -> (i32, i32) {
    %c0_i32 = arith.constant 0 : i32
    %c0_i32_0 = arith.constant 0 : i32
    %c0_i32_1 = arith.constant 0 : i32
    return %c0_i32, %c0_i32_0 : i32, i32
  }
  func.func @transform_6(%arg0: i32) -> (i32, i32) {
    %c0_i32 = arith.constant 0 : i32
    %c0_i32_0 = arith.constant 0 : i32
    %c0_i32_1 = arith.constant 0 : i32
    return %c0_i32, %c0_i32_0 : i32, i32
  }
  func.func @transform_7(%arg0: i32) -> (i32, i32, i32) {
    %c0_i32 = arith.constant 0 : i32
    %c0_i32_0 = arith.constant 0 : i32
    %c0_i32_1 = arith.constant 0 : i32
    return %arg0, %c0_i32, %c0_i32_0 : i32, i32, i32
  }
  func.func @transform_8(%arg0: i32) -> (i32, i32, i32, i32) {
    %c0_i32 = arith.constant 0 : i32
    %c0_i32_0 = arith.constant 0 : i32
    %c0_i32_1 = arith.constant 0 : i32
    %c0_i32_2 = arith.constant 0 : i32
    return %arg0, %c0_i32, %c0_i32_0, %c0_i32_1 : i32, i32, i32, i32
  }
}

</mosaic_0001>

<llo_original>
// kernel: tpu_custom_call.1
$region0: #{tpu_custom_call.1}
  #allocation0 [shape = 'u32[]', space=smem, size = 0x4, offset = 0x4, fixed_abs, tag = 'smem constant byte address 0x4 - core index']
  #allocation1 [shape = 'u32[72,128]{1,0:T(1,128)}', space=vmem, size = 0x9000, scoped, tag = 'internal scratch']
  %s0 = inlined_call_operand.hbm [shape: f32[2,8,32], index: 0, kind: input, shape index: {}]
  %s1 = inlined_call_operand.hbm [shape: bf16[32,96], index: 1, kind: input, shape index: {}]
  %s2 = inlined_call_operand.vmem [shape: f32[1,96], index: 2, kind: input, shape index: {}]
  %s3 = inlined_call_operand.hbm [shape: bf16[32,32], index: 3, kind: input, shape index: {}]
  %s4 = inlined_call_operand.vmem [shape: f32[1,32], index: 4, kind: input, shape index: {}]
  %s5 = inlined_call_operand.vmem [shape: f32[1,32], index: 5, kind: input, shape index: {}]
  %s6 = inlined_call_operand.vmem [shape: f32[1,32], index: 6, kind: input, shape index: {}]
  %s7 = inlined_call_operand.hbm [shape: f32[2,8,32], index: 7, kind: output, shape index: {0}]
  %s8 = inlined_call_operand.hbm [shape: f32[2,4,8,8], index: 8, kind: output, shape index: {1}]
  %9 = xla_tuple %s7, %s8
  %s10 = sld [smem:[#allocation0]]
  $region81: #{tpu_custom_call.1} parent=0
    _
  %s12 = ssub.s32 1, %s10
  %s13 = scalar_select 0, %s12, %s10
  $region1: #{tpu_custom_call.1} parent=0
    #allocation2 [shape = 'u8[8192]{0}', space=vmem, size = 0x2000, scoped, tag = 'input window, operand 0']
    #allocation3 [shape = 's32[2]{0}', space=sflag, size = 0x8, scoped, tag = 'scoped memory for tpu_custom_call.1']
    #allocation4 [shape = 's32[2]{0}', space=sflag, size = 0x8, scoped, tag = 'scoped memory for tpu_custom_call.1']
    #allocation5 [shape = 'u8[8192]{0}', space=vmem, size = 0x2000, scoped, tag = 'input window, operand 1, single buffered']
    #allocation6 [shape = 's32[1]{0}', space=sflag, size = 0x4, scoped, tag = 'scoped memory for tpu_custom_call.1']
    #allocation7 [shape = 'u8[8192]{0}', space=vmem, size = 0x2000, scoped, tag = 'input window, operand 3, single buffered']
    #allocation8 [shape = 'u8[8192]{0}', space=vmem, size = 0x2000, scoped, tag = 'output window, operand 0']
    #allocation9 [shape = 'u8[32768]{0}', space=vmem, size = 0x8000, scoped, tag = 'output window, operand 1']
    #allocation10 [shape = 's32[2]{0}', space=sflag, size = 0x8, scoped, tag = 'scoped memory for tpu_custom_call.1']
    %14 = vsyncpa [#allocation3], 0
    %s15 = scalar_lea.sflag [#allocation3], 1
    %16 = vsyncpa %s15, 0
    %17 = vsyncpa [#allocation6], 0
    %18 = vsyncpa [#allocation4], 0
    %s19 = scalar_lea.sflag [#allocation4], 1
    %20 = vsyncpa %s19, 0
    %21 = vsyncpa [#allocation10], 0
    %s22 = scalar_lea.sflag [#allocation10], 1
    %23 = vsyncpa %s22, 0
    loop: start=0, step=1, limit=4
    $region2: #{tpu_custom_call.1} parent=1 // loop_pre_header
      _
    $region3: #{tpu_custom_call.1} parent=1 // loop_header
      %s25 = sphi 0, %s29
      %p26 = scmp.ge.s32.totalorder %s25, 4
      %s35 = sphi 0, %s37
      %s38 = sphi 0, %s35
      %s39 = sphi 0, %s38
      %s55 = sphi 0, %s39
      %s59 = sphi 0, %s59
      %s61 = sphi 0, %s59
      %s62 = sphi 0, %s61
      %s76 = sphi 0, %s62
      %s80 = sphi 0, %s80
      %s82 = sphi 0, %s80
      %s83 = sphi 0, %s82
      %s97 = sphi 0, %s83
      %s101 = sphi 0, %s101
      %s103 = sphi 0, %s101
      %s104 = sphi 0, %s103
      %s118 = sphi 0, %s104
      %s122 = sphi 0, %s122
      %s124 = sphi 0, %s122
      %s125 = sphi 0, %s124
      %s139 = sphi 0, %s125
      %s143 = sphi 0, %s143
      %s145 = sphi 0, %s143
      %s146 = sphi 0, %s145
      %s160 = sphi 0, %s146
      %s164 = sphi 0, %s164
      %s166 = sphi 0, %s164
      %s167 = sphi 0, %s166
      %s181 = sphi 0, %s167
      %s187 = sphi 0, %s189
      %s190 = sphi 0, %s187
      %s191 = sphi 0, %s190
      %s207 = sphi 0, %s191
      %s213 = sphi 0, %s215
      %s216 = sphi 0, %s213
      %s217 = sphi 0, %s216
      %s233 = sphi 0, %s217
    $region4: #{tpu_custom_call.1} parent=1 // loop_header_branch
      %28 = sbr.rel (%p26) target = $region8
    $region5: #{tpu_custom_call.1} parent=1 // loop_body
      %s30 = ssub.s32 %s25, 1
      %s31 = ssub.s32 %s25, 2
      %s32 = sadd.s32 %s25, 1
      %s33 = ssub.s32 %s25, %s32
      %p34 = scmp.eq.s32.totalorder %s33, 0
      %s36 = sadd.s32 %s35, 1
      %s37 = scalar_select %p34, %s35, %s36
      %p40 = pneg %p34
      %p41 = scmp.eq.s32.totalorder %s25, 1
      %p42 = por %p40, %p41
      %p43 = scmp.ne.s32.totalorder %s35, %s38
      %p44 = scmp.eq.s32.totalorder %s25, 0
      %p45 = por %p43, %p44
      %p46 = scmp.ne.s32.totalorder %s35, %s38
      %p47 = scmp.eq.s32.totalorder %s30, 1
      %p48 = por %p46, %p47
      %p49 = scmp.ne.s32.totalorder %s38, %s39
      %p50 = scmp.eq.s32.totalorder %s30, 0
      %p51 = por %p49, %p50
      %p52 = scmp.ne.s32.totalorder %s38, %s39
      %p53 = scmp.eq.s32.totalorder %s31, 1
      %p54 = por %p52, %p53
      %p56 = scmp.ne.s32.totalorder %s39, %s55
      %p57 = scmp.eq.s32.totalorder %s31, 0
      %p58 = por %p56, %p57
      %s60 = sadd.s32 %s59, 1
      %p63 = scmp.eq.s32.totalorder %s25, 1
      %p64 = scmp.ne.s32.totalorder %s59, %s61
      %p65 = scmp.eq.s32.totalorder %s25, 0
      %p66 = por %p64, %p65
      %p67 = scmp.ne.s32.totalorder %s59, %s61
      %p68 = scmp.eq.s32.totalorder %s30, 1
      %p69 = por %p67, %p68
      %p70 = scmp.ne.s32.totalorder %s61, %s62
      %p71 = scmp.eq.s32.totalorder %s30, 0
      %p72 = por %p70, %p71
      %p73 = scmp.ne.s32.totalorder %s61, %s62
      %p74 = scmp.eq.s32.totalorder %s31, 1
      %p75 = por %p73, %p74
      %p77 = scmp.ne.s32.totalorder %s62, %s76
      %p78 = scmp.eq.s32.totalorder %s31, 0
      %p79 = por %p77, %p78
      %s81 = sadd.s32 %s80, 1
      %p84 = scmp.eq.s32.totalorder %s25, 1
      %p85 = scmp.ne.s32.totalorder %s80, %s82
      %p86 = scmp.eq.s32.totalorder %s25, 0
      %p87 = por %p85, %p86
      %p88 = scmp.ne.s32.totalorder %s80, %s82
      %p89 = scmp.eq.s32.totalorder %s30, 1
      %p90 = por %p88, %p89
      %p91 = scmp.ne.s32.totalorder %s82, %s83
      %p92 = scmp.eq.s32.totalorder %s30, 0
      %p93 = por %p91, %p92
      %p94 = scmp.ne.s32.totalorder %s82, %s83
      %p95 = scmp.eq.s32.totalorder %s31, 1
      %p96 = por %p94, %p95
      %p98 = scmp.ne.s32.totalorder %s83, %s97
      %p99 = scmp.eq.s32.totalorder %s31, 0
      %p100 = por %p98, %p99
      %s102 = sadd.s32 %s101, 1
      %p105 = scmp.eq.s32.totalorder %s25, 1
      %p106 = scmp.ne.s32.totalorder %s101, %s103
      %p107 = scmp.eq.s32.totalorder %s25, 0
      %p108 = por %p106, %p107
      %p109 = scmp.ne.s32.totalorder %s101, %s103
      %p110 = scmp.eq.s32.totalorder %s30, 1
      %p111 = por %p109, %p110
      %p112 = scmp.ne.s32.totalorder %s103, %s104
      %p113 = scmp.eq.s32.totalorder %s30, 0
      %p114 = por %p112, %p113
      %p115 = scmp.ne.s32.totalorder %s103, %s104
      %p116 = scmp.eq.s32.totalorder %s31, 1
      %p117 = por %p115, %p116
      %p119 = scmp.ne.s32.totalorder %s104, %s118
      %p120 = scmp.eq.s32.totalorder %s31, 0
      %p121 = por %p119, %p120
      %s123 = sadd.s32 %s122, 1
      %p126 = scmp.eq.s32.totalorder %s25, 1
      %p127 = scmp.ne.s32.totalorder %s122, %s124
      %p128 = scmp.eq.s32.totalorder %s25, 0
      %p129 = por %p127, %p128
      %p130 = scmp.ne.s32.totalorder %s122, %s124
      %p131 = scmp.eq.s32.totalorder %s30, 1
      %p132 = por %p130, %p131
      %p133 = scmp.ne.s32.totalorder %s124, %s125
      %p134 = scmp.eq.s32.totalorder %s30, 0
      %p135 = por %p133, %p134
      %p136 = scmp.ne.s32.totalorder %s124, %s125
      %p137 = scmp.eq.s32.totalorder %s31, 1
      %p138 = por %p136, %p137
      %p140 = scmp.ne.s32.totalorder %s125, %s139
      %p141 = scmp.eq.s32.totalorder %s31, 0
      %p142 = por %p140, %p141
      %s144 = sadd.s32 %s143, 1
      %p147 = scmp.eq.s32.totalorder %s25, 1
      %p148 = scmp.ne.s32.totalorder %s143, %s145
      %p149 = scmp.eq.s32.totalorder %s25, 0
      %p150 = por %p148, %p149
      %p151 = scmp.ne.s32.totalorder %s143, %s145
      %p152 = scmp.eq.s32.totalorder %s30, 1
      %p153 = por %p151, %p152
      %p154 = scmp.ne.s32.totalorder %s145, %s146
      %p155 = scmp.eq.s32.totalorder %s30, 0
      %p156 = por %p154, %p155
      %p157 = scmp.ne.s32.totalorder %s145, %s146
      %p158 = scmp.eq.s32.totalorder %s31, 1
      %p159 = por %p157, %p158
      %p161 = scmp.ne.s32.totalorder %s146, %s160
      %p162 = scmp.eq.s32.totalorder %s31, 0
      %p163 = por %p161, %p162
      %s165 = sadd.s32 %s164, 1
      %p168 = scmp.eq.s32.totalorder %s25, 1
      %p169 = scmp.ne.s32.totalorder %s164, %s166
      %p170 = scmp.eq.s32.totalorder %s25, 0
      %p171 = por %p169, %p170
      %p172 = scmp.ne.s32.totalorder %s164, %s166
      %p173 = scmp.eq.s32.totalorder %s30, 1
      %p174 = por %p172, %p173
      %p175 = scmp.ne.s32.totalorder %s166, %s167
      %p176 = scmp.eq.s32.totalorder %s30, 0
      %p177 = por %p175, %p176
      %p178 = scmp.ne.s32.totalorder %s166, %s167
      %p179 = scmp.eq.s32.totalorder %s31, 1
      %p180 = por %p178, %p179
      %p182 = scmp.ne.s32.totalorder %s167, %s181
      %p183 = scmp.eq.s32.totalorder %s31, 0
      %p184 = por %p182, %p183
      %s185 = ssub.s32 %s25, %s32
      %p186 = scmp.eq.s32.totalorder %s185, 0
      %s188 = sadd.s32 %s187, 1
      %s189 = scalar_select %p186, %s187, %s188
      %p192 = pneg %p186
      %p193 = scmp.eq.s32.totalorder %s25, 1
      %p194 = por %p192, %p193
      %p195 = scmp.ne.s32.totalorder %s187, %s190
      %p196 = scmp.eq.s32.totalorder %s25, 0
      %p197 = por %p195, %p196
      %p198 = scmp.ne.s32.totalorder %s187, %s190
      %p199 = scmp.eq.s32.totalorder %s30, 1
      %p200 = por %p198, %p199
      %p201 = scmp.ne.s32.totalorder %s190, %s191
      %p202 = scmp.eq.s32.totalorder %s30, 0
      %p203 = por %p201, %p202
      %p204 = scmp.ne.s32.totalorder %s190, %s191
      %p205 = scmp.eq.s32.totalorder %s31, 1
      %p206 = por %p204, %p205
      %p208 = scmp.ne.s32.totalorder %s191, %s207
      %p209 = scmp.eq.s32.totalorder %s31, 0
      %p210 = por %p208, %p209
      %s211 = ssub.s32 %s25, %s32
      %p212 = scmp.eq.s32.totalorder %s211, 0
      %s214 = sadd.s32 %s213, 1
      %s215 = scalar_select %p212, %s213, %s214
      %p218 = pneg %p212
      %p219 = scmp.eq.s32.totalorder %s25, 1
      %p220 = por %p218, %p219
      %p221 = scmp.ne.s32.totalorder %s213, %s216
      %p222 = scmp.eq.s32.totalorder %s25, 0
      %p223 = por %p221, %p222
      %p224 = scmp.ne.s32.totalorder %s213, %s216
      %p225 = scmp.eq.s32.totalorder %s30, 1
      %p226 = por %p224, %p225
      %p227 = scmp.ne.s32.totalorder %s216, %s217
      %p228 = scmp.eq.s32.totalorder %s30, 0
      %p229 = por %p227, %p228
      %p230 = scmp.ne.s32.totalorder %s216, %s217
      %p231 = scmp.eq.s32.totalorder %s31, 1
      %p232 = por %p230, %p231
      %p234 = scmp.ne.s32.totalorder %s217, %s233
      %p235 = scmp.eq.s32.totalorder %s31, 0
      %p236 = por %p234, %p235
      %p237 = scmp.le.s32.totalorder 1, %s25
      %p238 = scmp.lt.s32.totalorder %s25, 3
      %p239 = pnand %p237, %p238
      %p240 = pneg %p239
      // Predicated region
      $region9: #{tpu_custom_call.1} parent=5 // pred_check
        _
      $region10: #{tpu_custom_call.1} parent=5 // pred_check_branch
        %242 = sbr.rel (%p239) target = $region12
      $region11: #{tpu_custom_call.1} parent=5 // pred_region
        %s243 = ssub.s32 %s25, 1
        // Predicated region
        $region13: #{tpu_custom_call.1} parent=11 // pred_check
          %p244 = pneg %p72
        $region14: #{tpu_custom_call.1} parent=11 // pred_check_branch
          %246 = sbr.rel (%p244) target = $region16
        $region15: #{tpu_custom_call.1} parent=11 // pred_region
          %248 = vsyncadd [#allocation6], 0
          %s249 = sshll.u32 %s1, 4
          %s250 = int_to_ptr.hbm [resolvable:$true] %s249
          %s251 = sshll.u32 [#allocation5], 4
          %s252 = int_to_ptr.vmem [resolvable:$true] %s251
          %257 = dma.hbm_to_vmem [thread:$0]  %s250, 256, %s252, [#allocation6], 64, 64, 4
        $region16: #{tpu_custom_call.1} parent=11 // pred_fallthru
          _
        // Predicated region
        $region17: #{tpu_custom_call.1} parent=11 // pred_check
          %p258 = pneg %p93
        $region18: #{tpu_custom_call.1} parent=11 // pred_check_branch
          %260 = sbr.rel (%p258) target = $region20
        $region19: #{tpu_custom_call.1} parent=11 // pred_region
          _
        $region20: #{tpu_custom_call.1} parent=11 // pred_fallthru
          _
        // Predicated region
        $region21: #{tpu_custom_call.1} parent=11 // pred_check
          %p261 = pneg %p114
        $region22: #{tpu_custom_call.1} parent=11 // pred_check_branch
          %263 = sbr.rel (%p261) target = $region24
        $region23: #{tpu_custom_call.1} parent=11 // pred_region
          %265 = vsyncadd [#allocation6], 0
          %s266 = sshll.u32 %s3, 4
          %s267 = int_to_ptr.hbm [resolvable:$true] %s266
          %s268 = sshll.u32 [#allocation7], 4
          %s269 = int_to_ptr.vmem [resolvable:$true] %s268
          %274 = dma.hbm_to_vmem [thread:$0]  %s267, 256, %s269, [#allocation6], 64, 64, 4
        $region24: #{tpu_custom_call.1} parent=11 // pred_fallthru
          _
        // Predicated region
        $region25: #{tpu_custom_call.1} parent=11 // pred_check
          %p275 = pneg %p135
        $region26: #{tpu_custom_call.1} parent=11 // pred_check_branch
          %277 = sbr.rel (%p275) target = $region28
        $region27: #{tpu_custom_call.1} parent=11 // pred_region
          _
        $region28: #{tpu_custom_call.1} parent=11 // pred_fallthru
          _
        // Predicated region
        $region29: #{tpu_custom_call.1} parent=11 // pred_check
          %p278 = pneg %p156
        $region30: #{tpu_custom_call.1} parent=11 // pred_check_branch
          %280 = sbr.rel (%p278) target = $region32
        $region31: #{tpu_custom_call.1} parent=11 // pred_region
          _
        $region32: #{tpu_custom_call.1} parent=11 // pred_fallthru
          _
        // Predicated region
        $region33: #{tpu_custom_call.1} parent=11 // pred_check
          %p281 = pneg %p177
        $region34: #{tpu_custom_call.1} parent=11 // pred_check_branch
          %283 = sbr.rel (%p281) target = $region36
        $region35: #{tpu_custom_call.1} parent=11 // pred_region
          _
        $region36: #{tpu_custom_call.1} parent=11 // pred_fallthru
          _
      $region12: #{tpu_custom_call.1} parent=5 // pred_fallthru
        _
      %p284 = scmp.lt.s32.totalorder %s25, 2
      // Predicated region
      $region37: #{tpu_custom_call.1} parent=5 // pred_check
        %p285 = pneg %p284
      $region38: #{tpu_custom_call.1} parent=5 // pred_check_branch
        %287 = sbr.rel (%p285) target = $region40
      $region39: #{tpu_custom_call.1} parent=5 // pred_region
        // Predicated region
        $region41: #{tpu_custom_call.1} parent=39 // pred_check
          %p288 = pneg %p45
        $region42: #{tpu_custom_call.1} parent=39 // pred_check_branch
          %290 = sbr.rel (%p288) target = $region44
        $region43: #{tpu_custom_call.1} parent=39 // pred_region
          %s291 = sand.u32 %s35, 1
          %s292 = scalar_lea.sflag [#allocation3], %s291
          %s293 = sand.u32 %s35, 1
          %s294 = smul.addr %s293, 8
          %s295 = scalar_lea.vmem [#allocation2], %s294
          %297 = vsyncadd %s292, 0
          %s298 = smul.addr %s25, 8
          %s299 = scalar_lea.hbm %s0, %s298
          %s301 = sshll.u32 %s299, 4
          %s302 = int_to_ptr.hbm [resolvable:$true] %s301
          %s303 = sshll.u32 %s295, 4
          %s304 = int_to_ptr.vmem [resolvable:$true] %s303
          %306 = dma.hbm_to_vmem [thread:$0]  %s302, 128, %s304, %s292
        $region44: #{tpu_custom_call.1} parent=39 // pred_fallthru
          _
      $region40: #{tpu_custom_call.1} parent=5 // pred_fallthru
        _
      %p307 = scmp.le.s32.totalorder 1, %s25
      %p308 = scmp.lt.s32.totalorder %s25, 3
      %p309 = pnand %p307, %p308
      %p310 = pneg %p309
      // Predicated region
      $region45: #{tpu_custom_call.1} parent=5 // pred_check
        _
      $region46: #{tpu_custom_call.1} parent=5 // pred_check_branch
        %312 = sbr.rel (%p309) target = $region48
      $region47: #{tpu_custom_call.1} parent=5 // pred_region
        %s313 = ssub.s32 %s25, 1
        %s314 = sand.u32 %s38, 1
        %s315 = scalar_lea.sflag [#allocation3], %s314
        %s316 = sand.u32 %s38, 1
        %s317 = smul.addr %s316, 8
        %s318 = scalar_lea.vmem [#allocation2], %s317
        // Predicated region
        $region49: #{tpu_custom_call.1} parent=47 // pred_check
          %p319 = pneg %p51
        $region50: #{tpu_custom_call.1} parent=47 // pred_check_branch
          %321 = sbr.rel (%p319) target = $region52
        $region51: #{tpu_custom_call.1} parent=47 // pred_region
          %323 = dma.done %s315, 128
        $region52: #{tpu_custom_call.1} parent=47 // pred_fallthru
          _
        // Predicated region
        $region53: #{tpu_custom_call.1} parent=47 // pred_check
          %p324 = pneg %p72
        $region54: #{tpu_custom_call.1} parent=47 // pred_check_branch
          %326 = sbr.rel (%p324) target = $region56
        $region55: #{tpu_custom_call.1} parent=47 // pred_region
          %328 = dma.done [#allocation6], 256
        $region56: #{tpu_custom_call.1} parent=47 // pred_fallthru
          _
        // Predicated region
        $region57: #{tpu_custom_call.1} parent=47 // pred_check
          %p329 = pneg %p114
        $region58: #{tpu_custom_call.1} parent=47 // pred_check_branch
          %331 = sbr.rel (%p329) target = $region60
        $region59: #{tpu_custom_call.1} parent=47 // pred_region
          %333 = dma.done [#allocation6], 256
        $region60: #{tpu_custom_call.1} parent=47 // pred_fallthru
          _
        %s334 = sand.u32 %s38, 1
        %s335 = scalar_lea.sflag [#allocation3], %s334
        %s336 = sand.u32 %s38, 1
        %s337 = smul.addr %s336, 8
        %s338 = scalar_lea.vmem [#allocation2], %s337
        %p339 = pneg %p51
        %p340 = pneg %p48
        %p341 = pneg %p72
        %p342 = pneg %p69
        %p343 = pneg %p93
        %p344 = pneg %p90
        %p345 = pneg %p114
        %p346 = pneg %p111
        %p347 = pneg %p135
        %p348 = pneg %p132
        %p349 = pneg %p156
        %p350 = pneg %p153
        %p351 = pneg %p177
        %p352 = pneg %p174
        %p353 = pneg %p203
        %p354 = pneg %p200
        %s355 = sand.u32 %s190, 1
        %s356 = scalar_lea.sflag [#allocation4], %s355
        %s357 = sand.u32 %s190, 1
        %s358 = smul.addr %s357, 8
        %s359 = scalar_lea.vmem [#allocation8], %s358
        %p360 = pneg %p229
        %p361 = pneg %p226
        %s362 = sand.u32 %s216, 1
        %s363 = scalar_lea.sflag [#allocation10], %s362
        %s364 = sand.u32 %s216, 1
        %s365 = smul.addr %s364, 32
        %s366 = scalar_lea.vmem [#allocation9], %s365
        %v368 = vld [vmem:[%s318] sm:$0xff]
        %v369 = vpack.c.bf16 %v368, %v368
        %v370 = vld [vmem:[#allocation5] sm:$0xf]
        %v371 = vld [vmem:[#allocation5 + $0x4] sm:$0xf]
        %v372 = vld [vmem:[#allocation5 + $0x8] sm:$0xf]
        %v373 = vld [vmem:[#allocation5 + $0xc] sm:$0xf]
        %v374 = vld [vmem:[%s2] sm:$0x1]
        %v376 = vperm.slane %v374, 0
        %v382 = vunpack.c.l.b16 %v370
        %v383 = vunpack.c.l.b16 %v371
        %v384 = vunpack.c.l.b16 %v372
        %v385 = vunpack.c.l.b16 %v373
        %v386 = vpack.c.b16 %v383, %v382
        %v387 = vpack.c.b16 %v385, %v384
        %vm390 = vcmask 261120
        %v392 = vsel %vm390, %v369, 0
        %394 = vmatpush.bf16.msra.mxu0 0
        %395 = vmatpush.bf16.msra.mxu0 0
        %396 = vmatpush.bf16.msra.mxu0 0
        %397 = vmatpush.bf16.msra.mxu0 0
        %398 = vmatpush.bf16.msra.mxu0 0
        %399 = vmatpush.bf16.msra.mxu0 0
        %400 = vmatpush.bf16.msra.mxu0 %v387
        %401 = vmatpush.bf16.msra.mxu0 %v386
        %402 = vmatmul.bf16.gmra.mxu0 %v392
        %v403 = vpop.f32.mrf.mxu0
        %v404 = vadd.f32 %v376, %v403
        %v405 = vpop.f32.mrf.mxu0
        %406 = vdwg.mxu0
        %v407 = vlaneseq
        %v408 = vshrl.u32 %v407, 7
        %v409 = vlaneseq
        %v410 = vand.u32 %v409, 127
        %vm411 = vcmp.le.s32.totalorder %v410, %v408
        %v412 = vpack.c.bf16 %v404, %v404
        %414 = vrot.lane.b32.xlu0 %v412, 96
        %v415 = vpop.permute.xlu0 %414
        %vm416 = vcmask 64512
        %v418 = vsel %vm416, %v412, 0
        %v421 = vsel %vm416, %v415, 0
        %423 = vmatpush.bf16.xpose.msra.mxu0 0
        %424 = vmatpush.bf16.xpose.msra.mxu0 0
        %425 = vmatpush.bf16.xpose.msra.mxu0 0
        %426 = vmatpush.bf16.xpose.msra.mxu0 0
        %427 = vmatpush.bf16.xpose.msra.mxu0 0
        %428 = vmatpush.bf16.xpose.msra.mxu0 0
        %429 = vmatpush.bf16.xpose.msra.mxu0 0
        %430 = vmatpush.bf16.xpose.msra.mxu0 %v421
        %431 = vmatmul.bf16.gmra.mxu0 %v418
        %v432 = vpop.f32.mrf.mxu0
        %v433 = vadd.f32 0.0, %v432
        %v434 = vpop.f32.mrf.mxu0
        %435 = vdwg.mxu0
        %v436 = vsel %vm411, %v433, -1e+32
        %v437 = vsel %vm416, %v436, -inf
        %438 = vmax.xlane.f32.xlu0 %v437
        %v439 = vpop.xlane.xlu0 %438
        %v440 = vsub.f32 %v436, %v439
        %v441 = vmul.f32 %v440, 1.442695
        %v442 = vpow.pop %v441
        %v443 = vsel %vm416, %v442, 0.0
        %444 = vadd.xlane.f32.xlu0 %v443
        %v445 = vpop.xlane.xlu0 %444
        %v446 = vrcp.pop %v445
        %v447 = vmul.f32 %v442, %v446
        %448 = vst.msk [vmem:[%s366] sm:$0xff] %vm416, %v447
        %v449 = vpack.c.bf16 %v447, %v447
        %450 = vrot.lane.b32.xlu0 %v412, 64
        %v451 = vpop.permute.xlu0 %450
        %v453 = vsel %vm416, %v449, 0
        %vm455 = vcmask 1043456
        %v457 = vsel %vm455, %v451, 0
        %459 = vmatpush.bf16.msra.mxu0 0
        %460 = vmatpush.bf16.msra.mxu0 0
        %461 = vmatpush.bf16.msra.mxu0 0
        %462 = vmatpush.bf16.msra.mxu0 0
        %463 = vmatpush.bf16.msra.mxu0 0
        %464 = vmatpush.bf16.msra.mxu0 0
        %465 = vmatpush.bf16.msra.mxu0 0
        %466 = vmatpush.bf16.msra.mxu0 %v457
        %467 = vmatmul.bf16.gmra.mxu0 %v453
        %v468 = vpop.f32.mrf.mxu0
        %v469 = vadd.f32 0.0, %v468
        %v470 = vpop.f32.mrf.mxu0
        %471 = vdwg.mxu0
        %472 = vrot.lane.b32.xlu0 %v412, 120
        %v473 = vpop.permute.xlu0 %472
        %474 = vrot.lane.b32.xlu0 %v412, 88
        %v475 = vpop.permute.xlu0 %474
        %v477 = vsel %vm416, %v473, 0
        %v480 = vsel %vm416, %v475, 0
        %482 = vmatpush.bf16.xpose.msra.mxu0 0
        %483 = vmatpush.bf16.xpose.msra.mxu0 0
        %484 = vmatpush.bf16.xpose.msra.mxu0 0
        %485 = vmatpush.bf16.xpose.msra.mxu0 0
        %486 = vmatpush.bf16.xpose.msra.mxu0 0
        %487 = vmatpush.bf16.xpose.msra.mxu0 0
        %488 = vmatpush.bf16.xpose.msra.mxu0 0
        %489 = vmatpush.bf16.xpose.msra.mxu0 %v480
        %490 = vmatmul.bf16.gmra.mxu0 %v477
        %v491 = vpop.f32.mrf.mxu0
        %v492 = vadd.f32 0.0, %v491
        %v493 = vpop.f32.mrf.mxu0
        %494 = vdwg.mxu0
        %v495 = vsel %vm411, %v492, -1e+32
        %v496 = vsel %vm416, %v495, -inf
        %497 = vmax.xlane.f32.xlu0 %v496
        %v498 = vpop.xlane.xlu0 %497
        %v499 = vsub.f32 %v495, %v498
        %v500 = vmul.f32 %v499, 1.442695
        %v501 = vpow.pop %v500
        %v502 = vsel %vm416, %v501, 0.0
        %503 = vadd.xlane.f32.xlu0 %v502
        %v504 = vpop.xlane.xlu0 %503
        %v505 = vrcp.pop %v504
        %v506 = vmul.f32 %v501, %v505
        %s507 = scalar_lea.vmem %s366, 8 [#allocation9]
        %508 = vst.msk [vmem:[%s507] sm:$0xff] %vm416, %v506
        %v509 = vpack.c.bf16 %v506, %v506
        %510 = vrot.lane.b32.xlu0 %v412, 56
        %v511 = vpop.permute.xlu0 %510
        %v513 = vsel %vm416, %v509, 0
        %v516 = vsel %vm455, %v511, 0
        %518 = vmatpush.bf16.msra.mxu0 0
        %519 = vmatpush.bf16.msra.mxu0 0
        %520 = vmatpush.bf16.msra.mxu0 0
        %521 = vmatpush.bf16.msra.mxu0 0
        %522 = vmatpush.bf16.msra.mxu0 0
        %523 = vmatpush.bf16.msra.mxu0 0
        %524 = vmatpush.bf16.msra.mxu0 0
        %525 = vmatpush.bf16.msra.mxu0 %v516
        %526 = vmatmul.bf16.gmra.mxu0 %v513
        %v527 = vpop.f32.mrf.mxu0
        %v528 = vadd.f32 0.0, %v527
        %v529 = vpop.f32.mrf.mxu0
        %530 = vdwg.mxu0
        %531 = vrot.lane.b32.xlu0 %v412, 112
        %v532 = vpop.permute.xlu0 %531
        %533 = vrot.lane.b32.xlu0 %v412, 80
        %v534 = vpop.permute.xlu0 %533
        %v536 = vsel %vm416, %v532, 0
        %v539 = vsel %vm416, %v534, 0
        %541 = vmatpush.bf16.xpose.msra.mxu0 0
        %542 = vmatpush.bf16.xpose.msra.mxu0 0
        %543 = vmatpush.bf16.xpose.msra.mxu0 0
        %544 = vmatpush.bf16.xpose.msra.mxu0 0
        %545 = vmatpush.bf16.xpose.msra.mxu0 0
        %546 = vmatpush.bf16.xpose.msra.mxu0 0
        %547 = vmatpush.bf16.xpose.msra.mxu0 0
        %548 = vmatpush.bf16.xpose.msra.mxu0 %v539
        %549 = vmatmul.bf16.gmra.mxu0 %v536
        %v550 = vpop.f32.mrf.mxu0
        %v551 = vadd.f32 0.0, %v550
        %v552 = vpop.f32.mrf.mxu0
        %553 = vdwg.mxu0
        %v554 = vsel %vm411, %v551, -1e+32
        %v555 = vsel %vm416, %v554, -inf
        %556 = vmax.xlane.f32.xlu0 %v555
        %v557 = vpop.xlane.xlu0 %556
        %v558 = vsub.f32 %v554, %v557
        %v559 = vmul.f32 %v558, 1.442695
        %v560 = vpow.pop %v559
        %v561 = vsel %vm416, %v560, 0.0
        %562 = vadd.xlane.f32.xlu0 %v561
        %v563 = vpop.xlane.xlu0 %562
        %v564 = vrcp.pop %v563
        %v565 = vmul.f32 %v560, %v564
        %s566 = scalar_lea.vmem %s366, 16 [#allocation9]
        %567 = vst.msk [vmem:[%s566] sm:$0xff] %vm416, %v565
        %v568 = vpack.c.bf16 %v565, %v565
        %569 = vrot.lane.b32.xlu0 %v412, 48
        %v570 = vpop.permute.xlu0 %569
        %v572 = vsel %vm416, %v568, 0
        %v575 = vsel %vm455, %v570, 0
        %577 = vmatpush.bf16.msra.mxu0 0
        %578 = vmatpush.bf16.msra.mxu0 0
        %579 = vmatpush.bf16.msra.mxu0 0
        %580 = vmatpush.bf16.msra.mxu0 0
        %581 = vmatpush.bf16.msra.mxu0 0
        %582 = vmatpush.bf16.msra.mxu0 0
        %583 = vmatpush.bf16.msra.mxu0 0
        %584 = vmatpush.bf16.msra.mxu0 %v575
        %585 = vmatmul.bf16.gmra.mxu0 %v572
        %v586 = vpop.f32.mrf.mxu0
        %v587 = vadd.f32 0.0, %v586
        %v588 = vpop.f32.mrf.mxu0
        %589 = vdwg.mxu0
        %590 = vrot.lane.b32.xlu0 %v412, 104
        %v591 = vpop.permute.xlu0 %590
        %592 = vrot.lane.b32.xlu0 %v412, 72
        %v593 = vpop.permute.xlu0 %592
        %v595 = vsel %vm416, %v591, 0
        %v598 = vsel %vm416, %v593, 0
        %600 = vmatpush.bf16.xpose.msra.mxu0 0
        %601 = vmatpush.bf16.xpose.msra.mxu0 0
        %602 = vmatpush.bf16.xpose.msra.mxu0 0
        %603 = vmatpush.bf16.xpose.msra.mxu0 0
        %604 = vmatpush.bf16.xpose.msra.mxu0 0
        %605 = vmatpush.bf16.xpose.msra.mxu0 0
        %606 = vmatpush.bf16.xpose.msra.mxu0 0
        %607 = vmatpush.bf16.xpose.msra.mxu0 %v598
        %608 = vmatmul.bf16.gmra.mxu0 %v595
        %v609 = vpop.f32.mrf.mxu0
        %v610 = vadd.f32 0.0, %v609
        %v611 = vpop.f32.mrf.mxu0
        %612 = vdwg.mxu0
        %v613 = vsel %vm411, %v610, -1e+32
        %v614 = vsel %vm416, %v613, -inf
        %615 = vmax.xlane.f32.xlu0 %v614
        %v616 = vpop.xlane.xlu0 %615
        %v617 = vsub.f32 %v613, %v616
        %v618 = vmul.f32 %v617, 1.442695
        %v619 = vpow.pop %v618
        %v620 = vsel %vm416, %v619, 0.0
        %621 = vadd.xlane.f32.xlu0 %v620
        %v622 = vpop.xlane.xlu0 %621
        %v623 = vrcp.pop %v622
        %v624 = vmul.f32 %v619, %v623
        %s625 = scalar_lea.vmem %s366, 24 [#allocation9]
        %626 = vst.msk [vmem:[%s625] sm:$0xff] %vm416, %v624
        %v627 = vpack.c.bf16 %v624, %v624
        %628 = vrot.lane.b32.xlu0 %v412, 40
        %v629 = vpop.permute.xlu0 %628
        %v631 = vsel %vm416, %v627, 0
        %v634 = vsel %vm455, %v629, 0
        %636 = vmatpush.bf16.msra.mxu0 0
        %637 = vmatpush.bf16.msra.mxu0 0
        %638 = vmatpush.bf16.msra.mxu0 0
        %639 = vmatpush.bf16.msra.mxu0 0
        %640 = vmatpush.bf16.msra.mxu0 0
        %641 = vmatpush.bf16.msra.mxu0 0
        %642 = vmatpush.bf16.msra.mxu0 0
        %643 = vmatpush.bf16.msra.mxu0 %v634
        %644 = vmatmul.bf16.gmra.mxu0 %v631
        %v645 = vpop.f32.mrf.mxu0
        %v646 = vadd.f32 0.0, %v645
        %v647 = vpop.f32.mrf.mxu0
        %648 = vdwg.mxu0
        %650 = vrot.lane.b32.xlu0 %v528, 8
        %v651 = vpop.permute.xlu0 %650
        %654 = vrot.lane.b32.xlu0 %v587, 16
        %v655 = vpop.permute.xlu0 %654
        %658 = vrot.lane.b32.xlu0 %v646, 24
        %v659 = vpop.permute.xlu0 %658
        %v661 = vsel %vm416, %v469, %v651
        %vm662 = vcmask 130048
        %v663 = vsel %vm662, %v661, %v655
        %vm664 = vcmask 195584
        %v665 = vsel %vm664, %v663, %v659
        %v666 = vpack.c.bf16 %v665, %v665
        %v667 = vld [vmem:[#allocation7] sm:$0xf]
        %v668 = vld [vmem:[#allocation7 + $0x4] sm:$0xf]
        %v669 = vld [vmem:[#allocation7 + $0x8] sm:$0xf]
        %v670 = vld [vmem:[#allocation7 + $0xc] sm:$0xf]
        %v671 = vld [vmem:[%s4] sm:$0x1]
        %v673 = vperm.slane %v671, 0
        %v679 = vunpack.c.l.b16 %v667
        %v680 = vunpack.c.l.b16 %v668
        %v681 = vunpack.c.l.b16 %v669
        %v682 = vunpack.c.l.b16 %v670
        %v683 = vpack.c.b16 %v680, %v679
        %v684 = vpack.c.b16 %v682, %v681
        %v688 = vsel %vm390, %v666, 0
        %690 = vmatpush.bf16.msra.mxu0 0
        %691 = vmatpush.bf16.msra.mxu0 0
        %692 = vmatpush.bf16.msra.mxu0 0
        %693 = vmatpush.bf16.msra.mxu0 0
        %694 = vmatpush.bf16.msra.mxu0 0
        %695 = vmatpush.bf16.msra.mxu0 0
        %696 = vmatpush.bf16.msra.mxu0 %v684
        %697 = vmatpush.bf16.msra.mxu0 %v683
        %698 = vmatmul.bf16.gmra.mxu0 %v688
        %v699 = vpop.f32.mrf.mxu0
        %v700 = vadd.f32 %v673, %v699
        %v701 = vpop.f32.mrf.mxu0
        %702 = vdwg.mxu0
        %v703 = vadd.f32 %v700, %v368
        %v704 = vsel %vm390, %v703, 0.0
        %705 = vadd.xlane.f32.xlu0 %v704
        %v706 = vpop.xlane.xlu0 %705
        %v707 = vrcp.pop 32.0
        %v708 = vmul.f32 32.0, %v707
        %v709 = vsub.f32 1.0, %v708
        %v710 = vmul.f32 %v707, %v709
        %v711 = vadd.f32 %v707, %v710
        %vm712 = vweird.f32 %v707
        %v713 = vsel %vm712, %v707, %v711
        %v714 = vmul.f32 %v706, %v713
        %v715 = vsub.f32 %v703, %v714
        %v716 = vmul.f32 %v715, %v715
        %v717 = vsel %vm390, %v716, 0.0
        %718 = vadd.xlane.f32.xlu0 %v717
        %v719 = vpop.xlane.xlu0 %718
        %v720 = vmul.f32 %v719, %v713
        %v721 = vadd.f32 %v720, 1e-05
        %v722 = vrsqrt.pop %v721
        %v723 = vmul.f32 %v722, %v721
        %v724 = vmul.f32 %v723, %v722
        %v725 = vmul.f32 0.5, %v724
        %v726 = vsub.f32 1.5, %v725
        %v727 = vmul.f32 %v722, %v726
        %vm728 = vweird.f32 %v721
        %vm729 = vweird.f32 %v722
        %vm730 = vmor %vm728, %vm729
        %v731 = vsel %vm730, %v722, %v727
        %v732 = vmul.f32 %v715, %v731
        %v733 = vld [vmem:[%s5] sm:$0x1]
        %v735 = vperm.slane %v733, 0
        %v737 = vmul.f32 %v732, %v735
        %v738 = vld [vmem:[%s6] sm:$0x1]
        %v740 = vperm.slane %v738, 0
        %v742 = vadd.f32 %v737, %v740
        %743 = vst.msk [vmem:[%s359] sm:$0xff] %vm390, %v742
        %s744 = sand.u32 %s190, 1
        %s745 = scalar_lea.sflag [#allocation4], %s744
        %s746 = sand.u32 %s190, 1
        %s747 = smul.addr %s746, 8
        %s748 = scalar_lea.vmem [#allocation8], %s747
        %s749 = sand.u32 %s216, 1
        %s750 = scalar_lea.sflag [#allocation10], %s749
        %s751 = sand.u32 %s216, 1
        %s752 = smul.addr %s751, 32
        %s753 = scalar_lea.vmem [#allocation9], %s752
        // Predicated region
        $region61: #{tpu_custom_call.1} parent=47 // pred_check
          %p754 = pneg %p200
        $region62: #{tpu_custom_call.1} parent=47 // pred_check_branch
          %756 = sbr.rel (%p754) target = $region64
        $region63: #{tpu_custom_call.1} parent=47 // pred_region
          %758 = vsyncadd %s745, 0
          %s759 = smul.addr %s30, 8
          %s760 = scalar_lea.hbm %s7, %s759
          %s762 = sshll.u32 %s748, 4
          %s763 = int_to_ptr.vmem [resolvable:$true] %s762
          %s764 = sshll.u32 %s760, 4
          %s765 = int_to_ptr.hbm [resolvable:$true] %s764
          %767 = dma.vmem_to_hbm [thread:$0]  %s763, 128, %s765, %s745
        $region64: #{tpu_custom_call.1} parent=47 // pred_fallthru
          _
        // Predicated region
        $region65: #{tpu_custom_call.1} parent=47 // pred_check
          %p768 = pneg %p226
        $region66: #{tpu_custom_call.1} parent=47 // pred_check_branch
          %770 = sbr.rel (%p768) target = $region68
        $region67: #{tpu_custom_call.1} parent=47 // pred_region
          %772 = vsyncadd %s750, 0
          %s773 = smul.addr %s30, 4
          %s774 = smul.addr %s773, 8
          %s775 = scalar_lea.hbm %s8, %s774
          %s776 = sshll.u32 %s753, 4
          %s777 = int_to_ptr.vmem [resolvable:$true] %s776
          %s778 = sshll.u32 %s775, 4
          %s779 = int_to_ptr.hbm [resolvable:$true] %s778
          %784 = dma.vmem_to_hbm [thread:$0]  %s777, 512, %s779, %s750, 128, 128, 8
        $region68: #{tpu_custom_call.1} parent=47 // pred_fallthru
          _
      $region48: #{tpu_custom_call.1} parent=5 // pred_fallthru
        _
      %p785 = scmp.le.s32.totalorder 2, %s25
      // Predicated region
      $region69: #{tpu_custom_call.1} parent=5 // pred_check
        %p786 = pneg %p785
      $region70: #{tpu_custom_call.1} parent=5 // pred_check_branch
        %788 = sbr.rel (%p786) target = $region72
      $region71: #{tpu_custom_call.1} parent=5 // pred_region
        %s789 = ssub.s32 %s25, 2
        // Predicated region
        $region73: #{tpu_custom_call.1} parent=71 // pred_check
          %p790 = pneg %p206
        $region74: #{tpu_custom_call.1} parent=71 // pred_check_branch
          %792 = sbr.rel (%p790) target = $region76
        $region75: #{tpu_custom_call.1} parent=71 // pred_region
          %s793 = sand.u32 %s191, 1
          %s794 = scalar_lea.sflag [#allocation4], %s793
          %s795 = sand.u32 %s191, 1
          %s796 = smul.addr %s795, 8
          %s797 = scalar_lea.vmem [#allocation8], %s796
          %799 = dma.done %s794, 128
        $region76: #{tpu_custom_call.1} parent=71 // pred_fallthru
          _
        // Predicated region
        $region77: #{tpu_custom_call.1} parent=71 // pred_check
          %p800 = pneg %p232
        $region78: #{tpu_custom_call.1} parent=71 // pred_check_branch
          %802 = sbr.rel (%p800) target = $region80
        $region79: #{tpu_custom_call.1} parent=71 // pred_region
          %s803 = sand.u32 %s217, 1
          %s804 = scalar_lea.sflag [#allocation10], %s803
          %s805 = sand.u32 %s217, 1
          %s806 = smul.addr %s805, 32
          %s807 = scalar_lea.vmem [#allocation9], %s806
          %809 = dma.done %s804, 512
        $region80: #{tpu_custom_call.1} parent=71 // pred_fallthru
          _
      $region72: #{tpu_custom_call.1} parent=5 // pred_fallthru
        _
    $region6: #{tpu_custom_call.1} parent=1 // loop_footer
      %s29 = sadd.s32 1, %s25
    $region7: #{tpu_custom_call.1} parent=1 // loop_footer_branch
      %24 = sbr.rel target = $region3
    $region8: #{tpu_custom_call.1} parent=1 // loop_exit
      _
    %810 = vsyncpa [#allocation3], 1
    %s811 = scalar_lea.sflag [#allocation3], 1
    %812 = vsyncpa %s811, 1
    %813 = vsyncpa [#allocation6], 1
    %814 = vsyncpa [#allocation4], 1
    %s815 = scalar_lea.sflag [#allocation4], 1
    %816 = vsyncpa %s815, 1
    %817 = vsyncpa [#allocation10], 1
    %s818 = scalar_lea.sflag [#allocation10], 1
    %819 = vsyncpa %s818, 1

</llo_original>
